<compile_context>
chip_gen: v6e
topology: v6e:2x2x1
jax: 0.10.0
libtpu: 0.0.40
codegen_flags: <defaults>
</compile_context>

<pallas_src>
import math

import jax
import jax.numpy as jnp
from jax.experimental import pallas as pl
from jax.experimental.pallas import tpu as pltpu

EPS = 1e-12


def _round_up(x, m):
    return ((x + m - 1) // m) * m


def _pick_tile(n, align, max_tile):
    """Pick a tile (multiple of `align`, <= max_tile): the largest tile whose
    padded size is within ~6% of the minimal achievable padding."""
    max_tile = max(align, (max_tile // align) * align)
    if n <= max_tile:
        return _round_up(n, align)
    candidates = list(range(align, max_tile + 1, align))
    min_padded = min(_round_up(n, t) for t in candidates)
    allowed = min_padded + max(min_padded // 16, 0)
    for t in reversed(candidates):
        if _round_up(n, t) <= allowed:
            return t
    return align


def _vmem_budget_bytes():
    """~75% of physical VMEM per TensorCore, capped at 100 MiB, floored at 16 MiB."""
    try:
        cap = int(pltpu.get_tpu_info().vmem_capacity_bytes)
    except Exception:
        cap = 64 << 20
    return max(16 << 20, min((cap * 3) // 4, 100 << 20))


def _footprint_bytes(tile_b, tile_c, d, x_item, w_item, out_item, w_bufs):
    """True VMEM footprint: native itemsizes, actual buffer counts."""
    x_buf = 2 * tile_b * d * x_item                 # double-buffered embeddings tile
    w_buf = w_bufs * tile_c * d * w_item            # weight tiles (2 or 3 deep)
    o_buf = 2 * tile_b * tile_c * out_item          # double-buffered output tile
    ixn = 2 * tile_b * 128 * 4                      # (tile_b, 1) f32, lane-padded
    iwn = 2 * 8 * tile_c * 4                        # (1, tile_c) f32, sublane-padded
    tmp = tile_b * tile_c * 4                       # in-kernel f32 dot result
    return x_buf + w_buf + o_buf + ixn + iwn + tmp


def _make_kernel(matmul_dtype=None):
    def kernel(x_ref, w_ref, inv_xn_ref, inv_wn_ref, o_ref):
        # x_ref      : (tile_b, D)      embeddings tile (native dtype, un-normalized)
        # w_ref      : (tile_c, D)      weight tile     (native dtype, un-normalized)
        # inv_xn_ref : (tile_b, 1) f32  1 / max(||x_row||, eps)
        # inv_wn_ref : (1, tile_c) f32  1 / max(||w_row||, eps)
        # o_ref      : (tile_b, tile_c) cosine tile
        x = x_ref[...]
        w = w_ref[...]
        if matmul_dtype is not None:
            x = x.astype(matmul_dtype)
            w = w.astype(matmul_dtype)
        dots = jax.lax.dot_general(
            x,
            w,
            dimension_numbers=(((1,), (1,)), ((), ())),  # contract on D for both
            preferred_element_type=jnp.float32,
        )
        o_ref[...] = (dots * inv_xn_ref[...] * inv_wn_ref[...]).astype(o_ref.dtype)

    return kernel


def arc_margin_product_plain(embeddings, weight, *, matmul_dtype=None):
    """cosine = normalize(embeddings) @ normalize(weight).T

    matmul_dtype: optionally cast the MXU operands (e.g. jnp.bfloat16) for
    2-3x MXU throughput; norms/scaling/accumulation stay f32.  Default: native.
    """
    B, D = embeddings.shape
    C, D2 = weight.shape
    assert D == D2

    out_dtype = embeddings.dtype
    x_item = jnp.dtype(embeddings.dtype).itemsize
    w_item = jnp.dtype(weight.dtype).itemsize
    out_item = jnp.dtype(out_dtype).itemsize

    # Sublane packing of output rows: 8 for 4-byte, 16 for 2-byte, 32 for 1-byte.
    sub = max(8, 32 // out_item)
    small_batch = B <= 64

    tile_b = _pick_tile(B, sub, 256)
    max_tile_c = 2048 if small_batch else 512
    tile_c = _pick_tile(C, 128, max_tile_c)

    w_bufs = 3 if small_batch else 2
    budget = _vmem_budget_bytes()
    # Shrink the class (then batch) tile until the footprint fits the VMEM budget.
    while _footprint_bytes(tile_b, tile_c, D, x_item, w_item, out_item, w_bufs) > budget:
        if tile_c > 128:
            tile_c = max(128, _round_up(tile_c // 2, 128))
        elif tile_b > sub:
            tile_b = max(sub, (tile_b // 2 // sub) * sub)
        else:
            break

    B_pad = _round_up(B, tile_b)
    C_pad = _round_up(C, tile_c)
    grid = (B_pad // tile_b, C_pad // tile_c)

    # Inverse L2 norms, computed once in the wrapper.
    # rsqrt(max(ss, eps^2)) == 1 / max(sqrt(ss), eps)  (sqrt is monotone).
    xf = embeddings.astype(jnp.float32)
    wf = weight.astype(jnp.float32)
    inv_xn = jax.lax.rsqrt(
        jnp.maximum(jnp.sum(xf * xf, axis=-1, keepdims=True), EPS * EPS)
    )                                                     # (B, 1) f32
    inv_wn = jax.lax.rsqrt(
        jnp.maximum(jnp.sum(wf * wf, axis=-1), EPS * EPS)
    )[None, :]                                            # (1, C) f32

    x = embeddings
    w = weight
    if B_pad != B:
        x = jnp.pad(x, ((0, B_pad - B), (0, 0)))
        inv_xn = jnp.pad(inv_xn, ((0, B_pad - B), (0, 0)))
    if C_pad != C:
        w = jnp.pad(w, ((0, C_pad - C), (0, 0)))
        inv_wn = jnp.pad(inv_wn, ((0, 0), (0, C_pad - C)))

    footprint = _footprint_bytes(tile_b, tile_c, D, x_item, w_item, out_item, w_bufs)
    vmem_limit = int(min(budget, max(footprint + (4 << 20), 32 << 20)))

    # Deeper buffering of the weight stream only pays off when the class axis
    # actually iterates (pure weight-streaming regime).
    w_spec_kwargs = {}
    if small_batch and grid[1] > 2:
        w_spec_kwargs["pipeline_mode"] = pl.Buffered(3)

    cost = pl.CostEstimate(
        flops=2 * B_pad * C_pad * D,
        transcendentals=0,
        bytes_accessed=int(
            B_pad * D * x_item                    # each embeddings tile streamed once
            + grid[0] * C_pad * D * w_item        # W re-streamed once per batch tile
            + B_pad * C_pad * out_item            # output
            + B_pad * 4 + grid[0] * C_pad * 4     # inverse norms
        ),
    )

    out = pl.pallas_call(
        _make_kernel(matmul_dtype),
        out_shape=jax.ShapeDtypeStruct((B_pad, C_pad), out_dtype),
        grid_spec=pltpu.PrefetchScalarGridSpec(
            num_scalar_prefetch=0,
            grid=grid,
            in_specs=[
                # embeddings: depends only on the batch grid index
                pl.BlockSpec((tile_b, D), lambda i, j: (i, 0)),
                # weight: tiled over the class axis (dominant DMA stream)
                pl.BlockSpec((tile_c, D), lambda i, j: (j, 0), **w_spec_kwargs),
                # precomputed inverse norms
                pl.BlockSpec((tile_b, 1), lambda i, j: (i, 0)),
                pl.BlockSpec((1, tile_c), lambda i, j: (0, j)),
            ],
            out_specs=pl.BlockSpec((tile_b, tile_c), lambda i, j: (i, j)),
        ),
        compiler_params=pltpu.CompilerParams(
            # No scratch carry anywhere -> both axes independent (megacore on v7x).
            dimension_semantics=("parallel", "parallel"),
            vmem_limit_bytes=vmem_limit,
        ),
        cost_estimate=cost,
    )(x, w, inv_xn, inv_wn)

    if (B_pad, C_pad) != (B, C):
        out = out[:B, :C]
    return out


def reference(embeddings, weight):
    xn = embeddings / jnp.maximum(
        jnp.linalg.norm(embeddings, axis=-1, keepdims=True), EPS
    )
    wn = weight / jnp.maximum(jnp.linalg.norm(weight, axis=-1, keepdims=True), EPS)
    return xn @ wn.T


if __name__ == "__main__":
    # Small, module-consistent shapes.
    batch = 8
    in_embeddings = 32
    out_embeddings = 256

    key = jax.random.PRNGKey(0)
    k_x, k_w = jax.random.split(key)

    # Deterministic parameter init matching reset_parameters():
    # uniform(-stdv, stdv), stdv = 1/sqrt(in_embeddings)
    stdv = 1.0 / math.sqrt(in_embeddings)
    weight = jax.random.uniform(
        k_w, (out_embeddings, in_embeddings), jnp.float32, minval=-stdv, maxval=stdv
    )
    embeddings = jax.random.normal(k_x, (batch, in_embeddings), jnp.float32)

    cosine = arc_margin_product_plain(embeddings, weight)
    cosine = jax.block_until_ready(cosine)

    ref = reference(embeddings, weight)
    assert cosine.shape == (batch, out_embeddings)
    assert jnp.allclose(cosine, ref, atol=1e-5, rtol=1e-5), (
        float(jnp.max(jnp.abs(cosine - ref)))
    )

    print("KERNEL_OK")
</pallas_src>

<mosaic_0001>
module attributes {stable_mosaic.version = 11 : i64} {
  func.func @kernel(%arg0: i32, %arg1: i32, %arg2: memref<8x32xf32, #tpu.memory_space<vmem>>, %arg3: memref<256x32xf32, #tpu.memory_space<vmem>>, %arg4: memref<8x1xf32, #tpu.memory_space<vmem>>, %arg5: memref<1x256xf32, #tpu.memory_space<vmem>>, %arg6: memref<8x256xf32, #tpu.memory_space<vmem>>) attributes {dimension_semantics = [#tpu.dimension_semantics<parallel>, #tpu.dimension_semantics<parallel>], iteration_bounds = array<i64: 1, 1>, scalar_prefetch = 0 : i64, scratch_operands = 0 : i64, tpu.core_type = #tpu.core_type<tc>, window_params = [{transform_indices = @transform_0, window_bounds = array<i64: 8, 32>}, {transform_indices = @transform_1, window_bounds = array<i64: 256, 32>}, {transform_indices = @transform_2, window_bounds = array<i64: 8, 1>}, {transform_indices = @transform_3, window_bounds = array<i64: 1, 256>}, {transform_indices = @transform_4, window_bounds = array<i64: 8, 256>}]} {
    %c0 = arith.constant 0 : index
    %c0_0 = arith.constant 0 : index
    %0 = vector.load %arg2[%c0, %c0_0] : memref<8x32xf32, #tpu.memory_space<vmem>>, vector<8x32xf32>
    %c0_1 = arith.constant 0 : index
    %c0_2 = arith.constant 0 : index
    %1 = vector.load %arg3[%c0_1, %c0_2] : memref<256x32xf32, #tpu.memory_space<vmem>>, vector<256x32xf32>
    %cst = arith.constant dense<0.000000e+00> : vector<8x256xf32>
    %2 = tpu.matmul %0, %1, %cst {dimension_numbers = #tpu.dot_dimension_numbers<[1], [1], [0], [0], [0, 0, 1, 0], [], []>} : vector<8x32xf32>, vector<256x32xf32>, vector<8x256xf32> -> vector<8x256xf32>
    %c0_3 = arith.constant 0 : index
    %c0_4 = arith.constant 0 : index
    %3 = vector.load %arg4[%c0_3, %c0_4] : memref<8x1xf32, #tpu.memory_space<vmem>>, vector<8x1xf32>
    %4 = vector.broadcast %3 : vector<8x1xf32> to vector<8x256xf32>
    %5 = arith.mulf %2, %4 : vector<8x256xf32>
    %c0_5 = arith.constant 0 : index
    %c0_6 = arith.constant 0 : index
    %6 = vector.load %arg5[%c0_5, %c0_6] : memref<1x256xf32, #tpu.memory_space<vmem>>, vector<1x256xf32>
    %7 = vector.broadcast %6 : vector<1x256xf32> to vector<8x256xf32>
    %8 = arith.mulf %5, %7 : vector<8x256xf32>
    %c0_7 = arith.constant 0 : index
    %c0_8 = arith.constant 0 : index
    %9 = vector.load %arg6[%c0_7, %c0_8] : memref<8x256xf32, #tpu.memory_space<vmem>>, vector<8x256xf32>
    tpu.vector_store %arg6[%c0_7, %c0_8], %8 {strides = array<i32>} : memref<8x256xf32, #tpu.memory_space<vmem>>, vector<8x256xf32>,
    return
  }
  func.func @transform_0(%arg0: i32, %arg1: i32) -> (i32, i32) {
    %c0_i32 = arith.constant 0 : i32
    %c0_i32_0 = arith.constant 0 : i32
    return %arg0, %c0_i32 : i32, i32
  }
  func.func @transform_1(%arg0: i32, %arg1: i32) -> (i32, i32) {
    %c0_i32 = arith.constant 0 : i32
    %c0_i32_0 = arith.constant 0 : i32
    return %arg1, %c0_i32 : i32, i32
  }
  func.func @transform_2(%arg0: i32, %arg1: i32) -> (i32, i32) {
    %c0_i32 = arith.constant 0 : i32
    %c0_i32_0 = arith.constant 0 : i32
    return %arg0, %c0_i32 : i32, i32
  }
  func.func @transform_3(%arg0: i32, %arg1: i32) -> (i32, i32) {
    %c0_i32 = arith.constant 0 : i32
    %c0_i32_0 = arith.constant 0 : i32
    return %c0_i32, %arg1 : i32, i32
  }
  func.func @transform_4(%arg0: i32, %arg1: i32) -> (i32, i32) {
    %c0_i32 = arith.constant 0 : i32
    return %arg0, %arg1 : i32, i32
  }
}

</mosaic_0001>

<llo_original>
// kernel: tpu_custom_call.1
$region0: #{tpu_custom_call.1}
  #allocation0 [shape = 'u32[]', space=smem, size = 0x4, offset = 0x4, fixed_abs, tag = 'smem constant byte address 0x4 - core index']
  #allocation1 [shape = 'u32[144,128]{1,0:T(1,128)}', space=vmem, size = 0x12000, scoped, tag = 'internal scratch']
  %s0 = inlined_call_operand.vmem [shape: f32[8,32], index: 0, kind: input, shape index: {}]
  %s1 = inlined_call_operand.vmem [shape: f32[256,32], index: 1, kind: input, shape index: {}]
  %s2 = inlined_call_operand.vmem [shape: f32[8,1], index: 2, kind: input, shape index: {}]
  %s3 = inlined_call_operand.vmem [shape: f32[1,256], index: 3, kind: input, shape index: {}]
  %s4 = inlined_call_operand.hbm [shape: f32[8,256], index: 4, kind: output, shape index: {}]
  %s5 = sld [smem:[#allocation0]]
  $region26: #{tpu_custom_call.1} parent=0
    _
  %s7 = ssub.s32 1, %s5
  %s8 = scalar_select 0, %s7, %s5
  $region1: #{tpu_custom_call.1} parent=0
    #allocation2 [shape = 'u8[8192]{0}', space=vmem, size = 0x2000, scoped, tag = 'output window, operand 0, single buffered']
    #allocation3 [shape = 's32[1]{0}', space=sflag, size = 0x4, scoped, tag = 'scoped memory for tpu_custom_call.1']
    %9 = vsyncpa [#allocation3], 0
    // Predicated region
    $region2: #{tpu_custom_call.1} parent=1 // pred_check
      _
    $region3: #{tpu_custom_call.1} parent=1 // pred_check_branch
      %11 = sbr.rel (0) target = $region5
    $region4: #{tpu_custom_call.1} parent=1 // pred_region
      _
    $region5: #{tpu_custom_call.1} parent=1 // pred_fallthru
      _
    // Predicated region
    $region6: #{tpu_custom_call.1} parent=1 // pred_check
      _
    $region7: #{tpu_custom_call.1} parent=1 // pred_check_branch
      %13 = sbr.rel (0) target = $region9
    $region8: #{tpu_custom_call.1} parent=1 // pred_region
      _
    $region9: #{tpu_custom_call.1} parent=1 // pred_fallthru
      _
    // Predicated region
    $region10: #{tpu_custom_call.1} parent=1 // pred_check
      _
    $region11: #{tpu_custom_call.1} parent=1 // pred_check_branch
      %15 = sbr.rel (0) target = $region13
    $region12: #{tpu_custom_call.1} parent=1 // pred_region
      _
    $region13: #{tpu_custom_call.1} parent=1 // pred_fallthru
      _
    // Predicated region
    $region14: #{tpu_custom_call.1} parent=1 // pred_check
      _
    $region15: #{tpu_custom_call.1} parent=1 // pred_check_branch
      %17 = sbr.rel (0) target = $region17
    $region16: #{tpu_custom_call.1} parent=1 // pred_region
      _
    $region17: #{tpu_custom_call.1} parent=1 // pred_fallthru
      _
    %v18 = vld [vmem:[%s0] sm:$0xff]
    %v19 = vld [vmem:[%s1] sm:$0xff]
    %v20 = vld [vmem:[%s1 + $0x8] sm:$0xff]
    %v21 = vld [vmem:[%s1 + $0x10] sm:$0xff]
    %v22 = vld [vmem:[%s1 + $0x18] sm:$0xff]
    %v23 = vld [vmem:[%s1 + $0x20] sm:$0xff]
    %v24 = vld [vmem:[%s1 + $0x28] sm:$0xff]
    %v25 = vld [vmem:[%s1 + $0x30] sm:$0xff]
    %v26 = vld [vmem:[%s1 + $0x38] sm:$0xff]
    %v27 = vld [vmem:[%s1 + $0x40] sm:$0xff]
    %v28 = vld [vmem:[%s1 + $0x48] sm:$0xff]
    %v29 = vld [vmem:[%s1 + $0x50] sm:$0xff]
    %v30 = vld [vmem:[%s1 + $0x58] sm:$0xff]
    %v31 = vld [vmem:[%s1 + $0x60] sm:$0xff]
    %v32 = vld [vmem:[%s1 + $0x68] sm:$0xff]
    %v33 = vld [vmem:[%s1 + $0x70] sm:$0xff]
    %v34 = vld [vmem:[%s1 + $0x78] sm:$0xff]
    %v35 = vld [vmem:[%s1 + $0x80] sm:$0xff]
    %v36 = vld [vmem:[%s1 + $0x88] sm:$0xff]
    %v37 = vld [vmem:[%s1 + $0x90] sm:$0xff]
    %v38 = vld [vmem:[%s1 + $0x98] sm:$0xff]
    %v39 = vld [vmem:[%s1 + $0xa0] sm:$0xff]
    %v40 = vld [vmem:[%s1 + $0xa8] sm:$0xff]
    %v41 = vld [vmem:[%s1 + $0xb0] sm:$0xff]
    %v42 = vld [vmem:[%s1 + $0xb8] sm:$0xff]
    %v43 = vld [vmem:[%s1 + $0xc0] sm:$0xff]
    %v44 = vld [vmem:[%s1 + $0xc8] sm:$0xff]
    %v45 = vld [vmem:[%s1 + $0xd0] sm:$0xff]
    %v46 = vld [vmem:[%s1 + $0xd8] sm:$0xff]
    %v47 = vld [vmem:[%s1 + $0xe0] sm:$0xff]
    %v48 = vld [vmem:[%s1 + $0xe8] sm:$0xff]
    %v49 = vld [vmem:[%s1 + $0xf0] sm:$0xff]
    %v50 = vld [vmem:[%s1 + $0xf8] sm:$0xff]
    %vm51 = vcmask 261120
    %v53 = vsel %vm51, %v18, 0
    %v56 = vsel %vm51, %v19, 0
    %v59 = vsel %vm51, %v20, 0
    %v62 = vsel %vm51, %v21, 0
    %v65 = vsel %vm51, %v22, 0
    %v68 = vsel %vm51, %v23, 0
    %v71 = vsel %vm51, %v24, 0
    %v74 = vsel %vm51, %v25, 0
    %v77 = vsel %vm51, %v26, 0
    %v80 = vsel %vm51, %v27, 0
    %v83 = vsel %vm51, %v28, 0
    %v86 = vsel %vm51, %v29, 0
    %v89 = vsel %vm51, %v30, 0
    %v92 = vsel %vm51, %v31, 0
    %v95 = vsel %vm51, %v32, 0
    %v98 = vsel %vm51, %v33, 0
    %v101 = vsel %vm51, %v34, 0
    %v104 = vsel %vm51, %v35, 0
    %v107 = vsel %vm51, %v36, 0
    %v110 = vsel %vm51, %v37, 0
    %v113 = vsel %vm51, %v38, 0
    %v116 = vsel %vm51, %v39, 0
    %v119 = vsel %vm51, %v40, 0
    %v122 = vsel %vm51, %v41, 0
    %v125 = vsel %vm51, %v42, 0
    %v128 = vsel %vm51, %v43, 0
    %v131 = vsel %vm51, %v44, 0
    %v134 = vsel %vm51, %v45, 0
    %v137 = vsel %vm51, %v46, 0
    %v140 = vsel %vm51, %v47, 0
    %v143 = vsel %vm51, %v48, 0
    %v146 = vsel %vm51, %v49, 0
    %v149 = vsel %vm51, %v50, 0
    %151 = vmatprep.subr.mxu0 0.0
    %152 = vmatpush1.xpose.msra.mxu0 %v101
    %153 = vmatprep.subr.mxu0 0.0
    %154 = vmatpush1.xpose.msra.mxu0 %v98
    %155 = vmatprep.subr.mxu0 0.0
    %156 = vmatpush1.xpose.msra.mxu0 %v95
    %157 = vmatprep.subr.mxu0 0.0
    %158 = vmatpush1.xpose.msra.mxu0 %v92
    %159 = vmatprep.subr.mxu0 0.0
    %160 = vmatpush1.xpose.msra.mxu0 %v89
    %161 = vmatprep.subr.mxu0 0.0
    %162 = vmatpush1.xpose.msra.mxu0 %v86
    %163 = vmatprep.subr.mxu0 0.0
    %164 = vmatpush1.xpose.msra.mxu0 %v83
    %165 = vmatprep.subr.mxu0 0.0
    %166 = vmatpush1.xpose.msra.mxu0 %v80
    %167 = vmatprep.subr.mxu0 0.0
    %168 = vmatpush1.xpose.msra.mxu0 %v77
    %169 = vmatprep.subr.mxu0 0.0
    %170 = vmatpush1.xpose.msra.mxu0 %v74
    %171 = vmatprep.subr.mxu0 0.0
    %172 = vmatpush1.xpose.msra.mxu0 %v71
    %173 = vmatprep.subr.mxu0 0.0
    %174 = vmatpush1.xpose.msra.mxu0 %v68
    %175 = vmatprep.subr.mxu0 0.0
    %176 = vmatpush1.xpose.msra.mxu0 %v65
    %177 = vmatprep.subr.mxu0 0.0
    %178 = vmatpush1.xpose.msra.mxu0 %v62
    %179 = vmatprep.subr.mxu0 0.0
    %180 = vmatpush1.xpose.msra.mxu0 %v59
    %181 = vmatprep.subr.mxu0 0.0
    %182 = vmatpush1.xpose.msra.mxu0 %v56
    %183 = vmatprep.subr.mxu0 0.0
    %184 = vmatpush2.xpose.msra.mxu0 %v149
    %185 = vmatprep.subr.mxu0 0.0
    %186 = vmatpush2.xpose.msra.mxu0 %v146
    %187 = vmatprep.subr.mxu0 0.0
    %188 = vmatpush2.xpose.msra.mxu0 %v143
    %189 = vmatprep.subr.mxu0 0.0
    %190 = vmatpush2.xpose.msra.mxu0 %v140
    %191 = vmatprep.subr.mxu0 0.0
    %192 = vmatpush2.xpose.msra.mxu0 %v137
    %193 = vmatprep.subr.mxu0 0.0
    %194 = vmatpush2.xpose.msra.mxu0 %v134
    %195 = vmatprep.subr.mxu0 0.0
    %196 = vmatpush2.xpose.msra.mxu0 %v131
    %197 = vmatprep.subr.mxu0 0.0
    %198 = vmatpush2.xpose.msra.mxu0 %v128
    %199 = vmatprep.subr.mxu0 0.0
    %200 = vmatpush2.xpose.msra.mxu0 %v125
    %201 = vmatprep.subr.mxu0 0.0
    %202 = vmatpush2.xpose.msra.mxu0 %v122
    %203 = vmatprep.subr.mxu0 0.0
    %204 = vmatpush2.xpose.msra.mxu0 %v119
    %205 = vmatprep.subr.mxu0 0.0
    %206 = vmatpush2.xpose.msra.mxu0 %v116
    %207 = vmatprep.subr.mxu0 0.0
    %208 = vmatpush2.xpose.msra.mxu0 %v113
    %209 = vmatprep.subr.mxu0 0.0
    %210 = vmatpush2.xpose.msra.mxu0 %v110
    %211 = vmatprep.subr.mxu0 0.0
    %212 = vmatpush2.xpose.msra.mxu0 %v107
    %213 = vmatprep.subr.mxu0 0.0
    %214 = vmatpush2.xpose.msra.mxu0 %v104
    %215 = vmatprep.mubr.f32.mxu0 0.0
    %216 = vmatmul.mubr.f32.gmra.mxu0 %v53
    %v217 = vpop.f32.mrf.mxu0
    %v218 = vadd.f32 0.0, %v217
    %v219 = vpop.f32.mrf.mxu0
    %v220 = vadd.f32 0.0, %v219
    %221 = vdwg.mxu0
    %v222 = vld [vmem:[%s2] sm:$0xff]
    %224 = vset.pattern.permute.xlu0 0
    %225 = vperm.xlu0 %224, %v222
    %v226 = vpop.permute.xlu0 %225
    %v228 = vmul.f32 %v218, %v226
    %v229 = vmul.f32 %v220, %v226
    %v230 = vld [vmem:[%s3] sm:$0x3]
    %v232 = vlaneseq
    %v233 = vshrl.u32 %v232, 7
    %v234 = vsub.s32 0, %v233
    %v235 = vrot.slane %v230, %v234
    %v236 = vlaneseq
    %v237 = vshrl.u32 %v236, 7
    %v238 = vsub.s32 1, %v237
    %v239 = vrot.slane %v230, %v238
    %v242 = vmul.f32 %v228, %v235
    %v243 = vmul.f32 %v229, %v239
    %244 = vst [vmem:[#allocation2] sm:$0xff] %v242
    %245 = vst [vmem:[#allocation2 + $0x8] sm:$0xff] %v243
    // Predicated region
    $region18: #{tpu_custom_call.1} parent=1 // pred_check
      _
    $region19: #{tpu_custom_call.1} parent=1 // pred_check_branch
      %247 = sbr.rel (0) target = $region21
    $region20: #{tpu_custom_call.1} parent=1 // pred_region
      %s249 = ssub.s32 256, 256
      %250 = vsyncadd [#allocation3], %s249
      %s252 = sshll.u32 [#allocation2], 4
      %s253 = int_to_ptr.vmem [resolvable:$true] %s252
      %255 = dma.vmem_to_hbm [thread:$0]  %s253, 256, %s4, [#allocation3]
    $region21: #{tpu_custom_call.1} parent=1 // pred_fallthru
      _
    // Predicated region
    $region22: #{tpu_custom_call.1} parent=1 // pred_check
      _
    $region23: #{tpu_custom_call.1} parent=1 // pred_check_branch
      %257 = sbr.rel (0) target = $region25
    $region24: #{tpu_custom_call.1} parent=1 // pred_region
      %258 = dma.done [#allocation3], 256
    $region25: #{tpu_custom_call.1} parent=1 // pred_fallthru
      _
    %259 = vsyncpa [#allocation3], 1

</llo_original>
